<compile_context>
chip_gen: v7x
topology: tpu7x:2x2x1
jax: 0.10.0
libtpu: 0.0.40
codegen_flags: <defaults>
</compile_context>

<pallas_src>
import jax
import jax.numpy as jnp
from jax.experimental import pallas as pl
from jax.experimental.pallas import tpu as pltpu

PATCH = 4        # patch size of the patch-embed / patch-expand
FEAT = 128       # lane-dense padded token feature dim (C*4*4 zero-padded to 128)
EMBED = 128      # token embedding dim (lane-dense, fills MXU width)
TM_TARGET = 256  # preferred row tile (multiple of 8); shrunk for tiny inputs


def _round_up(x, m):
    return ((x + m - 1) // m) * m


# ---------------------------------------------------------------------------
# Single fused Pallas kernel:
#   embed -> LN -> gated (a|g) matmul -> SiLU gate -> out proj (+res)
#   -> patch-expand proj (+outer image residual)
# ---------------------------------------------------------------------------
def _fused_vmunet_kernel(tok_ref, w_emb_ref, b_emb_ref, gamma_ref, beta_ref,
                         w_ag_ref, b_ag_ref, w_o_ref, b_o_ref,
                         w_exp_ref, b_exp_ref, o_ref):
    tok = tok_ref[...]                                   # (TM, FEAT) f32
    tok_bf = tok.astype(jnp.bfloat16)

    # ---- patch embed (MXU, f32 accumulate) ----
    h = jnp.dot(tok_bf, w_emb_ref[...],
                preferred_element_type=jnp.float32) + b_emb_ref[...]

    # ---- VSS-style gated token block (LayerNorm stats kept in f32) ----
    mu = jnp.mean(h, axis=-1, keepdims=True)
    var = jnp.mean(jnp.square(h - mu), axis=-1, keepdims=True)
    xn = (h - mu) * jax.lax.rsqrt(var + 1e-5)
    xn = xn * gamma_ref[...] + beta_ref[...]

    # merged (a|g) branch: one matmul with N = 2*EMBED instead of two
    ag = jnp.dot(xn.astype(jnp.bfloat16), w_ag_ref[...],
                 preferred_element_type=jnp.float32) + b_ag_ref[...]
    a = ag[:, :EMBED]
    g = ag[:, EMBED:]
    y = (a * jax.nn.sigmoid(a)) * (g * jax.nn.sigmoid(g))   # silu(a)*silu(g)

    h = jnp.dot(y.astype(jnp.bfloat16), w_o_ref[...],
                preferred_element_type=jnp.float32) + b_o_ref[...] + h

    # ---- patch expand + outer residual (out_unet + inputs), one store ----
    o_ref[...] = (jnp.dot(h.astype(jnp.bfloat16), w_exp_ref[...],
                          preferred_element_type=jnp.float32)
                  + b_exp_ref[...] + tok)


def fused_forward_tokens(tokens, params, tm):
    """tokens: (M_pad, FEAT) f32 with M_pad % tm == 0."""
    M, F = tokens.shape
    assert M % tm == 0 and F == FEAT
    full = lambda i: (0, 0)   # weight blocks are grid-invariant (stay in VMEM)
    return pl.pallas_call(
        _fused_vmunet_kernel,
        out_shape=jax.ShapeDtypeStruct((M, F), jnp.float32),
        grid_spec=pltpu.PrefetchScalarGridSpec(
            num_scalar_prefetch=0,
            grid=(M // tm,),
            in_specs=[
                pl.BlockSpec((tm, F), lambda i: (i, 0)),        # token tile
                pl.BlockSpec((FEAT, EMBED), full),              # w_embed
                pl.BlockSpec((1, EMBED), full),                 # b_embed
                pl.BlockSpec((1, EMBED), full),                 # gamma
                pl.BlockSpec((1, EMBED), full),                 # beta
                pl.BlockSpec((EMBED, 2 * EMBED), full),         # w_ag (a|g merged)
                pl.BlockSpec((1, 2 * EMBED), full),              # b_ag
                pl.BlockSpec((EMBED, EMBED), full),             # w_o
                pl.BlockSpec((1, EMBED), full),                 # b_o
                pl.BlockSpec((EMBED, FEAT), full),              # w_expand
                pl.BlockSpec((1, FEAT), full),                  # b_expand
            ],
            out_specs=pl.BlockSpec((tm, F), lambda i: (i, 0)),
        ),
        compiler_params=pltpu.CompilerParams(
            dimension_semantics=("parallel",),   # megacore split on v7x
            vmem_limit_bytes=64 << 20,
        ),
    )(tokens, params["w_embed"], params["b_embed"], params["gamma"],
      params["beta"], params["w_ag"], params["b_ag"], params["w_o"],
      params["b_o"], params["w_expand"], params["b_expand"])


# ---------------------------------------------------------------------------
# Glue: patchify / unpatchify (pure reshape+transpose, no compute)
# ---------------------------------------------------------------------------
def patchify(x, p):
    B, C, H, W = x.shape
    x = x.reshape(B, C, H // p, p, W // p, p)
    x = x.transpose(0, 2, 4, 1, 3, 5)          # (B, H/p, W/p, C, p, p)
    return x.reshape(B * (H // p) * (W // p), C * p * p)


def unpatchify(t, B, C, H, W, p):
    t = t.reshape(B, H // p, W // p, C, p, p)
    t = t.transpose(0, 3, 1, 4, 2, 5)          # (B, C, H/p, p, W/p, p)
    return t.reshape(B, C, H, W)


# ---------------------------------------------------------------------------
# Parameters (deterministic init, bf16 weights / f32 biases+LN) and forward
# ---------------------------------------------------------------------------
def init_params(key, in_ch):
    pd = in_ch * PATCH * PATCH
    assert pd <= FEAT
    ks = jax.random.split(key, 4)
    f32, bf16 = jnp.float32, jnp.bfloat16
    w_embed = 0.05 * jax.random.normal(ks[0], (FEAT, EMBED), f32)
    w_embed = w_embed.at[pd:, :].set(0.0)      # padded token cols are zero anyway
    w_ag = 0.05 * jax.random.normal(ks[1], (EMBED, 2 * EMBED), f32)
    w_o = 0.05 * jax.random.normal(ks[2], (EMBED, EMBED), f32)
    w_exp = 0.05 * jax.random.normal(ks[3], (EMBED, FEAT), f32)
    w_exp = w_exp.at[:, pd:].set(0.0)          # padded output cols sliced off
    return {
        "w_embed": w_embed.astype(bf16),
        "b_embed": jnp.zeros((1, EMBED), f32),
        "gamma": jnp.ones((1, EMBED), f32),
        "beta": jnp.zeros((1, EMBED), f32),
        "w_ag": w_ag.astype(bf16),
        "b_ag": jnp.zeros((1, 2 * EMBED), f32),
        "w_o": w_o.astype(bf16),
        "b_o": jnp.zeros((1, EMBED), f32),
        "w_expand": w_exp.astype(bf16),
        "b_expand": jnp.zeros((1, FEAT), f32),
    }


@jax.jit
def net_forward(x, params):
    B, C, H, W = x.shape
    pd = C * PATCH * PATCH
    tokens = patchify(x, PATCH)                          # (M, C*16)
    M = tokens.shape[0]

    # row tile: prefer TM_TARGET, shrink (multiple of 8) for tiny inputs;
    # pad rows so the grid covers M exactly (no silently-dropped tail).
    tm = TM_TARGET if M >= TM_TARGET else _round_up(M, 8)
    m_pad = _round_up(M, tm)

    tok_pad = jnp.zeros((m_pad, FEAT), jnp.float32)
    tok_pad = tok_pad.at[:M, :pd].set(tokens)            # lane-dense 128-wide

    out_pad = fused_forward_tokens(tok_pad, params, tm)  # single fused kernel
    out_tok = out_pad[:M, :pd]
    return unpatchify(out_tok, B, C, H, W, PATCH)


if __name__ == "__main__":
    key = jax.random.PRNGKey(0)
    k_x, k_p = jax.random.split(key)
    # shapes consistent with the module: batch=2, channels=3 (VMUNet input), 16x16 image
    x = jax.random.normal(k_x, (2, 3, 16, 16), jnp.float32)
    params = init_params(k_p, in_ch=3)

    out = net_forward(x, params)
    jax.block_until_ready(out)
    assert out.shape == x.shape and out.dtype == jnp.float32
    assert bool(jnp.all(jnp.isfinite(out)))
    print("KERNEL_OK")
</pallas_src>

<mosaic_0001>
module attributes {stable_mosaic.version = 11 : i64} {
  func.func @_fused_vmunet_kernel(%arg0: i32, %arg1: memref<32x128xf32, #tpu.memory_space<vmem>>, %arg2: memref<128x128xbf16, #tpu.memory_space<vmem>>, %arg3: memref<1x128xf32, #tpu.memory_space<vmem>>, %arg4: memref<1x128xf32, #tpu.memory_space<vmem>>, %arg5: memref<1x128xf32, #tpu.memory_space<vmem>>, %arg6: memref<128x256xbf16, #tpu.memory_space<vmem>>, %arg7: memref<1x256xf32, #tpu.memory_space<vmem>>, %arg8: memref<128x128xbf16, #tpu.memory_space<vmem>>, %arg9: memref<1x128xf32, #tpu.memory_space<vmem>>, %arg10: memref<128x128xbf16, #tpu.memory_space<vmem>>, %arg11: memref<1x128xf32, #tpu.memory_space<vmem>>, %arg12: memref<32x128xf32, #tpu.memory_space<vmem>>) attributes {dimension_semantics = [#tpu.dimension_semantics<parallel>], iteration_bounds = array<i64: 1>, scalar_prefetch = 0 : i64, scratch_operands = 0 : i64, tpu.core_type = #tpu.core_type<tc>, window_params = [{transform_indices = @transform_0, window_bounds = array<i64: 32, 128>}, {pipeline_mode = #tpu.pipeline_mode<synchronous>, transform_indices = @transform_1, window_bounds = array<i64: 128, 128>}, {pipeline_mode = #tpu.pipeline_mode<synchronous>, transform_indices = @transform_2, window_bounds = array<i64: 1, 128>}, {pipeline_mode = #tpu.pipeline_mode<synchronous>, transform_indices = @transform_3, window_bounds = array<i64: 1, 128>}, {pipeline_mode = #tpu.pipeline_mode<synchronous>, transform_indices = @transform_4, window_bounds = array<i64: 1, 128>}, {pipeline_mode = #tpu.pipeline_mode<synchronous>, transform_indices = @transform_5, window_bounds = array<i64: 128, 256>}, {pipeline_mode = #tpu.pipeline_mode<synchronous>, transform_indices = @transform_6, window_bounds = array<i64: 1, 256>}, {pipeline_mode = #tpu.pipeline_mode<synchronous>, transform_indices = @transform_7, window_bounds = array<i64: 128, 128>}, {pipeline_mode = #tpu.pipeline_mode<synchronous>, transform_indices = @transform_8, window_bounds = array<i64: 1, 128>}, {pipeline_mode = #tpu.pipeline_mode<synchronous>, transform_indices = @transform_9, window_bounds = array<i64: 128, 128>}, {pipeline_mode = #tpu.pipeline_mode<synchronous>, transform_indices = @transform_10, window_bounds = array<i64: 1, 128>}, {transform_indices = @transform_11, window_bounds = array<i64: 32, 128>}]} {
    %c0 = arith.constant 0 : index
    %c0_0 = arith.constant 0 : index
    %0 = vector.load %arg1[%c0, %c0_0] : memref<32x128xf32, #tpu.memory_space<vmem>>, vector<32x128xf32>
    %1 = arith.truncf %0 : vector<32x128xf32> to vector<32x128xbf16>
    %c0_1 = arith.constant 0 : index
    %c0_2 = arith.constant 0 : index
    %2 = vector.load %arg2[%c0_1, %c0_2] : memref<128x128xbf16, #tpu.memory_space<vmem>>, vector<128x128xbf16>
    %cst = arith.constant dense<0.000000e+00> : vector<32x128xf32>
    %3 = tpu.matmul %1, %2, %cst {dimension_numbers = #tpu.dot_dimension_numbers<[1], [0], [0], [1], [0, 0, 1, 1], [], []>} : vector<32x128xbf16>, vector<128x128xbf16>, vector<32x128xf32> -> vector<32x128xf32>
    %c0_3 = arith.constant 0 : index
    %c0_4 = arith.constant 0 : index
    %4 = vector.load %arg3[%c0_3, %c0_4] : memref<1x128xf32, #tpu.memory_space<vmem>>, vector<1x128xf32>
    %5 = vector.broadcast %4 : vector<1x128xf32> to vector<32x128xf32>
    %6 = arith.addf %3, %5 : vector<32x128xf32>
    %cst_5 = arith.constant dense<0.000000e+00> : vector<32xf32>
    %7 = vector.multi_reduction <add>, %6, %cst_5 [1] : vector<32x128xf32> to vector<32xf32>
    %8 = vector.shape_cast %7 : vector<32xf32> to vector<32x1xf32>
    %cst_6 = arith.constant 1.280000e+02 : f32
    %9 = vector.broadcast %cst_6 : f32 to vector<32x1xf32>
    %10 = arith.divf %8, %9 : vector<32x1xf32>
    %11 = vector.broadcast %10 : vector<32x1xf32> to vector<32x128xf32>
    %12 = arith.subf %6, %11 : vector<32x128xf32>
    %13 = arith.mulf %12, %12 : vector<32x128xf32>
    %cst_7 = arith.constant dense<0.000000e+00> : vector<32xf32>
    %14 = vector.multi_reduction <add>, %13, %cst_7 [1] : vector<32x128xf32> to vector<32xf32>
    %15 = vector.shape_cast %14 : vector<32xf32> to vector<32x1xf32>
    %cst_8 = arith.constant 1.280000e+02 : f32
    %16 = vector.broadcast %cst_8 : f32 to vector<32x1xf32>
    %17 = arith.divf %15, %16 : vector<32x1xf32>
    %18 = vector.broadcast %10 : vector<32x1xf32> to vector<32x128xf32>
    %19 = arith.subf %6, %18 : vector<32x128xf32>
    %cst_9 = arith.constant 9.99999974E-6 : f32
    %20 = vector.broadcast %cst_9 : f32 to vector<32x1xf32>
    %21 = arith.addf %17, %20 : vector<32x1xf32>
    %22 = math.rsqrt %21 : vector<32x1xf32>
    %23 = vector.broadcast %22 : vector<32x1xf32> to vector<32x128xf32>
    %24 = arith.mulf %19, %23 : vector<32x128xf32>
    %c0_10 = arith.constant 0 : index
    %c0_11 = arith.constant 0 : index
    %25 = vector.load %arg4[%c0_10, %c0_11] : memref<1x128xf32, #tpu.memory_space<vmem>>, vector<1x128xf32>
    %26 = vector.broadcast %25 : vector<1x128xf32> to vector<32x128xf32>
    %27 = arith.mulf %24, %26 : vector<32x128xf32>
    %c0_12 = arith.constant 0 : index
    %c0_13 = arith.constant 0 : index
    %28 = vector.load %arg5[%c0_12, %c0_13] : memref<1x128xf32, #tpu.memory_space<vmem>>, vector<1x128xf32>
    %29 = vector.broadcast %28 : vector<1x128xf32> to vector<32x128xf32>
    %30 = arith.addf %27, %29 : vector<32x128xf32>
    %31 = arith.truncf %30 : vector<32x128xf32> to vector<32x128xbf16>
    %c0_14 = arith.constant 0 : index
    %c0_15 = arith.constant 0 : index
    %32 = vector.load %arg6[%c0_14, %c0_15] : memref<128x256xbf16, #tpu.memory_space<vmem>>, vector<128x256xbf16>
    %cst_16 = arith.constant dense<0.000000e+00> : vector<32x256xf32>
    %33 = tpu.matmul %31, %32, %cst_16 {dimension_numbers = #tpu.dot_dimension_numbers<[1], [0], [0], [1], [0, 0, 1, 1], [], []>} : vector<32x128xbf16>, vector<128x256xbf16>, vector<32x256xf32> -> vector<32x256xf32>
    %c0_17 = arith.constant 0 : index
    %c0_18 = arith.constant 0 : index
    %34 = vector.load %arg7[%c0_17, %c0_18] : memref<1x256xf32, #tpu.memory_space<vmem>>, vector<1x256xf32>
    %35 = vector.broadcast %34 : vector<1x256xf32> to vector<32x256xf32>
    %36 = arith.addf %33, %35 : vector<32x256xf32>
    %37 = vector.extract_strided_slice %36 {offsets = [0, 0], sizes = [32, 128], strides = [1, 1]} : vector<32x256xf32> to vector<32x128xf32>
    %38 = vector.extract_strided_slice %36 {offsets = [0, 128], sizes = [32, 128], strides = [1, 1]} : vector<32x256xf32> to vector<32x128xf32>
    %39 = arith.negf %37 : vector<32x128xf32>
    %40 = math.exp %39 : vector<32x128xf32>
    %cst_19 = arith.constant 1.000000e+00 : f32
    %41 = vector.broadcast %cst_19 : f32 to vector<32x128xf32>
    %42 = arith.addf %41, %40 : vector<32x128xf32>
    %43 = arith.divf %41, %42 : vector<32x128xf32>
    %44 = arith.mulf %37, %43 : vector<32x128xf32>
    %45 = arith.negf %38 : vector<32x128xf32>
    %46 = math.exp %45 : vector<32x128xf32>
    %cst_20 = arith.constant 1.000000e+00 : f32
    %47 = vector.broadcast %cst_20 : f32 to vector<32x128xf32>
    %48 = arith.addf %47, %46 : vector<32x128xf32>
    %49 = arith.divf %47, %48 : vector<32x128xf32>
    %50 = arith.mulf %38, %49 : vector<32x128xf32>
    %51 = arith.mulf %44, %50 : vector<32x128xf32>
    %52 = arith.truncf %51 : vector<32x128xf32> to vector<32x128xbf16>
    %c0_21 = arith.constant 0 : index
    %c0_22 = arith.constant 0 : index
    %53 = vector.load %arg8[%c0_21, %c0_22] : memref<128x128xbf16, #tpu.memory_space<vmem>>, vector<128x128xbf16>
    %cst_23 = arith.constant dense<0.000000e+00> : vector<32x128xf32>
    %54 = tpu.matmul %52, %53, %cst_23 {dimension_numbers = #tpu.dot_dimension_numbers<[1], [0], [0], [1], [0, 0, 1, 1], [], []>} : vector<32x128xbf16>, vector<128x128xbf16>, vector<32x128xf32> -> vector<32x128xf32>
    %c0_24 = arith.constant 0 : index
    %c0_25 = arith.constant 0 : index
    %55 = vector.load %arg9[%c0_24, %c0_25] : memref<1x128xf32, #tpu.memory_space<vmem>>, vector<1x128xf32>
    %56 = vector.broadcast %55 : vector<1x128xf32> to vector<32x128xf32>
    %57 = arith.addf %54, %56 : vector<32x128xf32>
    %58 = arith.addf %57, %6 : vector<32x128xf32>
    %59 = arith.truncf %58 : vector<32x128xf32> to vector<32x128xbf16>
    %c0_26 = arith.constant 0 : index
    %c0_27 = arith.constant 0 : index
    %60 = vector.load %arg10[%c0_26, %c0_27] : memref<128x128xbf16, #tpu.memory_space<vmem>>, vector<128x128xbf16>
    %cst_28 = arith.constant dense<0.000000e+00> : vector<32x128xf32>
    %61 = tpu.matmul %59, %60, %cst_28 {dimension_numbers = #tpu.dot_dimension_numbers<[1], [0], [0], [1], [0, 0, 1, 1], [], []>} : vector<32x128xbf16>, vector<128x128xbf16>, vector<32x128xf32> -> vector<32x128xf32>
    %c0_29 = arith.constant 0 : index
    %c0_30 = arith.constant 0 : index
    %62 = vector.load %arg11[%c0_29, %c0_30] : memref<1x128xf32, #tpu.memory_space<vmem>>, vector<1x128xf32>
    %63 = vector.broadcast %62 : vector<1x128xf32> to vector<32x128xf32>
    %64 = arith.addf %61, %63 : vector<32x128xf32>
    %65 = arith.addf %64, %0 : vector<32x128xf32>
    %c0_31 = arith.constant 0 : index
    %c0_32 = arith.constant 0 : index
    %66 = vector.load %arg12[%c0_31, %c0_32] : memref<32x128xf32, #tpu.memory_space<vmem>>, vector<32x128xf32>
    tpu.vector_store %arg12[%c0_31, %c0_32], %65 {strides = array<i32>} : memref<32x128xf32, #tpu.memory_space<vmem>>, vector<32x128xf32>,
    return
  }
  func.func @transform_0(%arg0: i32) -> (i32, i32) {
    %c0_i32 = arith.constant 0 : i32
    %c0_i32_0 = arith.constant 0 : i32
    return %arg0, %c0_i32 : i32, i32
  }
  func.func @transform_1(%arg0: i32) -> (i32, i32) {
    %c0_i32 = arith.constant 0 : i32
    %c0_i32_0 = arith.constant 0 : i32
    %c0_i32_1 = arith.constant 0 : i32
    return %c0_i32, %c0_i32_0 : i32, i32
  }
  func.func @transform_2(%arg0: i32) -> (i32, i32) {
    %c0_i32 = arith.constant 0 : i32
    %c0_i32_0 = arith.constant 0 : i32
    %c0_i32_1 = arith.constant 0 : i32
    return %c0_i32, %c0_i32_0 : i32, i32
  }
  func.func @transform_3(%arg0: i32) -> (i32, i32) {
    %c0_i32 = arith.constant 0 : i32
    %c0_i32_0 = arith.constant 0 : i32
    %c0_i32_1 = arith.constant 0 : i32
    return %c0_i32, %c0_i32_0 : i32, i32
  }
  func.func @transform_4(%arg0: i32) -> (i32, i32) {
    %c0_i32 = arith.constant 0 : i32
    %c0_i32_0 = arith.constant 0 : i32
    %c0_i32_1 = arith.constant 0 : i32
    return %c0_i32, %c0_i32_0 : i32, i32
  }
  func.func @transform_5(%arg0: i32) -> (i32, i32) {
    %c0_i32 = arith.constant 0 : i32
    %c0_i32_0 = arith.constant 0 : i32
    %c0_i32_1 = arith.constant 0 : i32
    return %c0_i32, %c0_i32_0 : i32, i32
  }
  func.func @transform_6(%arg0: i32) -> (i32, i32) {
    %c0_i32 = arith.constant 0 : i32
    %c0_i32_0 = arith.constant 0 : i32
    %c0_i32_1 = arith.constant 0 : i32
    return %c0_i32, %c0_i32_0 : i32, i32
  }
  func.func @transform_7(%arg0: i32) -> (i32, i32) {
    %c0_i32 = arith.constant 0 : i32
    %c0_i32_0 = arith.constant 0 : i32
    %c0_i32_1 = arith.constant 0 : i32
    return %c0_i32, %c0_i32_0 : i32, i32
  }
  func.func @transform_8(%arg0: i32) -> (i32, i32) {
    %c0_i32 = arith.constant 0 : i32
    %c0_i32_0 = arith.constant 0 : i32
    %c0_i32_1 = arith.constant 0 : i32
    return %c0_i32, %c0_i32_0 : i32, i32
  }
  func.func @transform_9(%arg0: i32) -> (i32, i32) {
    %c0_i32 = arith.constant 0 : i32
    %c0_i32_0 = arith.constant 0 : i32
    %c0_i32_1 = arith.constant 0 : i32
    return %c0_i32, %c0_i32_0 : i32, i32
  }
  func.func @transform_10(%arg0: i32) -> (i32, i32) {
    %c0_i32 = arith.constant 0 : i32
    %c0_i32_0 = arith.constant 0 : i32
    %c0_i32_1 = arith.constant 0 : i32
    return %c0_i32, %c0_i32_0 : i32, i32
  }
  func.func @transform_11(%arg0: i32) -> (i32, i32) {
    %c0_i32 = arith.constant 0 : i32
    %c0_i32_0 = arith.constant 0 : i32
    return %arg0, %c0_i32 : i32, i32
  }
}

</mosaic_0001>

<llo_original>
// kernel: net_forward.1
$region0: #{net_forward.1}
  #allocation0 [shape = 'u32[]', space=smem, size = 0x4, offset = 0x4, fixed_abs, tag = 'smem constant byte address 0x4 - core index']
  #allocation1 [shape = 'u32[144,128]{1,0:T(1,128)}', space=vmem, size = 0x12000, scoped, tag = 'internal scratch']
  %s0 = inlined_call_operand.hbm [shape: f32[32,128], index: 0, kind: input, shape index: {}]
  %s1 = inlined_call_operand.hbm [shape: bf16[128,128], index: 1, kind: input, shape index: {}]
  %s2 = inlined_call_operand.hbm [shape: f32[1,128], index: 2, kind: input, shape index: {}]
  %s3 = inlined_call_operand.hbm [shape: f32[1,128], index: 3, kind: input, shape index: {}]
  %s4 = inlined_call_operand.hbm [shape: f32[1,128], index: 4, kind: input, shape index: {}]
  %s5 = inlined_call_operand.hbm [shape: bf16[128,256], index: 5, kind: input, shape index: {}]
  %s6 = inlined_call_operand.hbm [shape: f32[1,256], index: 6, kind: input, shape index: {}]
  %s7 = inlined_call_operand.hbm [shape: bf16[128,128], index: 7, kind: input, shape index: {}]
  %s8 = inlined_call_operand.hbm [shape: f32[1,128], index: 8, kind: input, shape index: {}]
  %s9 = inlined_call_operand.hbm [shape: bf16[128,128], index: 9, kind: input, shape index: {}]
  %s10 = inlined_call_operand.hbm [shape: f32[1,128], index: 10, kind: input, shape index: {}]
  %s11 = inlined_call_operand.hbm [shape: f32[32,128], index: 11, kind: output, shape index: {}]
  %s12 = sld [smem:[#allocation0]]
  $region98: #{net_forward.1} parent=0
    _
  %s14 = ssub.s32 1, %s12
  %s15 = scalar_select 0, %s14, %s12
  $region1: #{net_forward.1} parent=0
    #allocation2 [shape = 'u8[16384]{0}', space=vmem, size = 0x4000, scoped, tag = 'input window, operand 0, single buffered']
    #allocation3 [shape = 's32[1]{0}', space=sflag, size = 0x4, scoped, tag = 'scoped memory for net_forward.1']
    #allocation4 [shape = 's32[1]{0}', space=sflag, size = 0x4, scoped, tag = 'scoped memory for net_forward.1']
    #allocation5 [shape = 'u8[32768]{0}', space=vmem, size = 0x8000, scoped, tag = 'input window, operand 1, single buffered']
    #allocation6 [shape = 's32[1]{0}', space=sflag, size = 0x4, scoped, tag = 'scoped memory for net_forward.1']
    #allocation7 [shape = 'u8[512]{0}', space=vmem, size = 0x400, scoped, tag = 'input window, operand 2, single buffered']
    #allocation8 [shape = 'u8[512]{0}', space=vmem, size = 0x400, scoped, tag = 'input window, operand 3, single buffered']
    #allocation9 [shape = 's32[1]{0}', space=sflag, size = 0x4, scoped, tag = 'scoped memory for net_forward.1']
    #allocation10 [shape = 'u8[512]{0}', space=vmem, size = 0x400, scoped, tag = 'input window, operand 4, single buffered']
    #allocation11 [shape = 'u8[65536]{0}', space=vmem, size = 0x10000, scoped, tag = 'input window, operand 5, single buffered']
    #allocation12 [shape = 's32[1]{0}', space=sflag, size = 0x4, scoped, tag = 'scoped memory for net_forward.1']
    #allocation13 [shape = 'u8[1024]{0}', space=vmem, size = 0x400, scoped, tag = 'input window, operand 6, single buffered']
    #allocation14 [shape = 'u8[32768]{0}', space=vmem, size = 0x8000, scoped, tag = 'input window, operand 7, single buffered']
    #allocation15 [shape = 's32[1]{0}', space=sflag, size = 0x4, scoped, tag = 'scoped memory for net_forward.1']
    #allocation16 [shape = 'u8[512]{0}', space=vmem, size = 0x400, scoped, tag = 'input window, operand 8, single buffered']
    #allocation17 [shape = 'u8[32768]{0}', space=vmem, size = 0x8000, scoped, tag = 'input window, operand 9, single buffered']
    #allocation18 [shape = 's32[1]{0}', space=sflag, size = 0x4, scoped, tag = 'scoped memory for net_forward.1']
    #allocation19 [shape = 'u8[512]{0}', space=vmem, size = 0x400, scoped, tag = 'input window, operand 10, single buffered']
    #allocation20 [shape = 'u8[16384]{0}', space=vmem, size = 0x4000, scoped, tag = 'output window, operand 0, single buffered']
    %16 = vsyncpa [#allocation3], 0
    %17 = vsyncpa [#allocation6], 0
    %18 = vsyncpa [#allocation9], 0
    %19 = vsyncpa [#allocation12], 0
    %20 = vsyncpa [#allocation15], 0
    %21 = vsyncpa [#allocation18], 0
    %22 = vsyncpa [#allocation4], 0
    // Predicated region
    $region2: #{net_forward.1} parent=1 // pred_check
      _
    $region3: #{net_forward.1} parent=1 // pred_check_branch
      %24 = sbr.rel (0) target = $region5
    $region4: #{net_forward.1} parent=1 // pred_region
      %s26 = ssub.s32 512, 512
      %27 = vsyncadd [#allocation3], %s26
      %s28 = sshll.u32 [#allocation2], 4
      %s29 = int_to_ptr.vmem [resolvable:$true] %s28
      %34 = dma.hbm_to_vmem [thread:$0]  %s0, 512, %s29, [#allocation3], 128, 128, 8
    $region5: #{net_forward.1} parent=1 // pred_fallthru
      _
    // Predicated region
    $region6: #{net_forward.1} parent=1 // pred_check
      _
    $region7: #{net_forward.1} parent=1 // pred_check_branch
      %36 = sbr.rel (0) target = $region9
    $region8: #{net_forward.1} parent=1 // pred_region
      %s38 = ssub.s32 1024, 1024
      %39 = vsyncadd [#allocation6], %s38
      %s40 = sshll.u32 [#allocation5], 4
      %s41 = int_to_ptr.vmem [resolvable:$true] %s40
      %46 = dma.hbm_to_vmem [thread:$0]  %s1, 1024, %s41, [#allocation6], 64, 64, 4
    $region9: #{net_forward.1} parent=1 // pred_fallthru
      _
    // Predicated region
    $region10: #{net_forward.1} parent=1 // pred_check
      _
    $region11: #{net_forward.1} parent=1 // pred_check_branch
      %48 = sbr.rel (0) target = $region13
    $region12: #{net_forward.1} parent=1 // pred_region
      %s50 = ssub.s32 16, 16
      %51 = vsyncadd [#allocation6], %s50
      %s53 = sshll.u32 [#allocation7], 4
      %s54 = int_to_ptr.vmem [resolvable:$true] %s53
      %56 = dma.hbm_to_vmem [thread:$0]  %s2, 16, %s54, [#allocation6]
    $region13: #{net_forward.1} parent=1 // pred_fallthru
      _
    // Predicated region
    $region14: #{net_forward.1} parent=1 // pred_check
      _
    $region15: #{net_forward.1} parent=1 // pred_check_branch
      %58 = sbr.rel (0) target = $region17
    $region16: #{net_forward.1} parent=1 // pred_region
      %s60 = ssub.s32 16, 16
      %61 = vsyncadd [#allocation9], %s60
      %s63 = sshll.u32 [#allocation8], 4
      %s64 = int_to_ptr.vmem [resolvable:$true] %s63
      %66 = dma.hbm_to_vmem [thread:$0]  %s3, 16, %s64, [#allocation9]
    $region17: #{net_forward.1} parent=1 // pred_fallthru
      _
    // Predicated region
    $region18: #{net_forward.1} parent=1 // pred_check
      _
    $region19: #{net_forward.1} parent=1 // pred_check_branch
      %68 = sbr.rel (0) target = $region21
    $region20: #{net_forward.1} parent=1 // pred_region
      %s70 = ssub.s32 16, 16
      %71 = vsyncadd [#allocation9], %s70
      %s73 = sshll.u32 [#allocation10], 4
      %s74 = int_to_ptr.vmem [resolvable:$true] %s73
      %76 = dma.hbm_to_vmem [thread:$0]  %s4, 16, %s74, [#allocation9]
    $region21: #{net_forward.1} parent=1 // pred_fallthru
      _
    // Predicated region
    $region22: #{net_forward.1} parent=1 // pred_check
      _
    $region23: #{net_forward.1} parent=1 // pred_check_branch
      %78 = sbr.rel (0) target = $region25
    $region24: #{net_forward.1} parent=1 // pred_region
      %s80 = ssub.s32 2048, 2048
      %81 = vsyncadd [#allocation12], %s80
      %s82 = sshll.u32 [#allocation11], 4
      %s83 = int_to_ptr.vmem [resolvable:$true] %s82
      %88 = dma.hbm_to_vmem [thread:$0]  %s5, 2048, %s83, [#allocation12], 128, 128, 8
    $region25: #{net_forward.1} parent=1 // pred_fallthru
      _
    // Predicated region
    $region26: #{net_forward.1} parent=1 // pred_check
      _
    $region27: #{net_forward.1} parent=1 // pred_check_branch
      %90 = sbr.rel (0) target = $region29
    $region28: #{net_forward.1} parent=1 // pred_region
      %s92 = ssub.s32 32, 32
      %93 = vsyncadd [#allocation12], %s92
      %s95 = sshll.u32 [#allocation13], 4
      %s96 = int_to_ptr.vmem [resolvable:$true] %s95
      %98 = dma.hbm_to_vmem [thread:$0]  %s6, 32, %s96, [#allocation12]
    $region29: #{net_forward.1} parent=1 // pred_fallthru
      _
    // Predicated region
    $region30: #{net_forward.1} parent=1 // pred_check
      _
    $region31: #{net_forward.1} parent=1 // pred_check_branch
      %100 = sbr.rel (0) target = $region33
    $region32: #{net_forward.1} parent=1 // pred_region
      %s102 = ssub.s32 1024, 1024
      %103 = vsyncadd [#allocation15], %s102
      %s104 = sshll.u32 [#allocation14], 4
      %s105 = int_to_ptr.vmem [resolvable:$true] %s104
      %110 = dma.hbm_to_vmem [thread:$0]  %s7, 1024, %s105, [#allocation15], 64, 64, 4
    $region33: #{net_forward.1} parent=1 // pred_fallthru
      _
    // Predicated region
    $region34: #{net_forward.1} parent=1 // pred_check
      _
    $region35: #{net_forward.1} parent=1 // pred_check_branch
      %112 = sbr.rel (0) target = $region37
    $region36: #{net_forward.1} parent=1 // pred_region
      %s114 = ssub.s32 16, 16
      %115 = vsyncadd [#allocation15], %s114
      %s117 = sshll.u32 [#allocation16], 4
      %s118 = int_to_ptr.vmem [resolvable:$true] %s117
      %120 = dma.hbm_to_vmem [thread:$0]  %s8, 16, %s118, [#allocation15]
    $region37: #{net_forward.1} parent=1 // pred_fallthru
      _
    // Predicated region
    $region38: #{net_forward.1} parent=1 // pred_check
      _
    $region39: #{net_forward.1} parent=1 // pred_check_branch
      %122 = sbr.rel (0) target = $region41
    $region40: #{net_forward.1} parent=1 // pred_region
      %s124 = ssub.s32 1024, 1024
      %125 = vsyncadd [#allocation18], %s124
      %s126 = sshll.u32 [#allocation17], 4
      %s127 = int_to_ptr.vmem [resolvable:$true] %s126
      %132 = dma.hbm_to_vmem [thread:$0]  %s9, 1024, %s127, [#allocation18], 64, 64, 4
    $region41: #{net_forward.1} parent=1 // pred_fallthru
      _
    // Predicated region
    $region42: #{net_forward.1} parent=1 // pred_check
      _
    $region43: #{net_forward.1} parent=1 // pred_check_branch
      %134 = sbr.rel (0) target = $region45
    $region44: #{net_forward.1} parent=1 // pred_region
      %s136 = ssub.s32 16, 16
      %137 = vsyncadd [#allocation18], %s136
      %s139 = sshll.u32 [#allocation19], 4
      %s140 = int_to_ptr.vmem [resolvable:$true] %s139
      %142 = dma.hbm_to_vmem [thread:$0]  %s10, 16, %s140, [#allocation18]
    $region45: #{net_forward.1} parent=1 // pred_fallthru
      _
    // Predicated region
    $region46: #{net_forward.1} parent=1 // pred_check
      _
    $region47: #{net_forward.1} parent=1 // pred_check_branch
      %144 = sbr.rel (0) target = $region49
    $region48: #{net_forward.1} parent=1 // pred_region
      %145 = dma.done [#allocation3], 512
    $region49: #{net_forward.1} parent=1 // pred_fallthru
      _
    // Predicated region
    $region50: #{net_forward.1} parent=1 // pred_check
      _
    $region51: #{net_forward.1} parent=1 // pred_check_branch
      %147 = sbr.rel (0) target = $region53
    $region52: #{net_forward.1} parent=1 // pred_region
      %148 = dma.done [#allocation6], 1024
    $region53: #{net_forward.1} parent=1 // pred_fallthru
      _
    // Predicated region
    $region54: #{net_forward.1} parent=1 // pred_check
      _
    $region55: #{net_forward.1} parent=1 // pred_check_branch
      %150 = sbr.rel (0) target = $region57
    $region56: #{net_forward.1} parent=1 // pred_region
      %151 = dma.done [#allocation6], 16
    $region57: #{net_forward.1} parent=1 // pred_fallthru
      _
    // Predicated region
    $region58: #{net_forward.1} parent=1 // pred_check
      _
    $region59: #{net_forward.1} parent=1 // pred_check_branch
      %153 = sbr.rel (0) target = $region61
    $region60: #{net_forward.1} parent=1 // pred_region
      %154 = dma.done [#allocation9], 16
    $region61: #{net_forward.1} parent=1 // pred_fallthru
      _
    // Predicated region
    $region62: #{net_forward.1} parent=1 // pred_check
      _
    $region63: #{net_forward.1} parent=1 // pred_check_branch
      %156 = sbr.rel (0) target = $region65
    $region64: #{net_forward.1} parent=1 // pred_region
      %157 = dma.done [#allocation9], 16
    $region65: #{net_forward.1} parent=1 // pred_fallthru
      _
    // Predicated region
    $region66: #{net_forward.1} parent=1 // pred_check
      _
    $region67: #{net_forward.1} parent=1 // pred_check_branch
      %159 = sbr.rel (0) target = $region69
    $region68: #{net_forward.1} parent=1 // pred_region
      %160 = dma.done [#allocation12], 2048
    $region69: #{net_forward.1} parent=1 // pred_fallthru
      _
    // Predicated region
    $region70: #{net_forward.1} parent=1 // pred_check
      _
    $region71: #{net_forward.1} parent=1 // pred_check_branch
      %162 = sbr.rel (0) target = $region73
    $region72: #{net_forward.1} parent=1 // pred_region
      %163 = dma.done [#allocation12], 32
    $region73: #{net_forward.1} parent=1 // pred_fallthru
      _
    // Predicated region
    $region74: #{net_forward.1} parent=1 // pred_check
      _
    $region75: #{net_forward.1} parent=1 // pred_check_branch
      %165 = sbr.rel (0) target = $region77
    $region76: #{net_forward.1} parent=1 // pred_region
      %166 = dma.done [#allocation15], 1024
    $region77: #{net_forward.1} parent=1 // pred_fallthru
      _
    // Predicated region
    $region78: #{net_forward.1} parent=1 // pred_check
      _
    $region79: #{net_forward.1} parent=1 // pred_check_branch
      %168 = sbr.rel (0) target = $region81
    $region80: #{net_forward.1} parent=1 // pred_region
      %169 = dma.done [#allocation15], 16
    $region81: #{net_forward.1} parent=1 // pred_fallthru
      _
    // Predicated region
    $region82: #{net_forward.1} parent=1 // pred_check
      _
    $region83: #{net_forward.1} parent=1 // pred_check_branch
      %171 = sbr.rel (0) target = $region85
    $region84: #{net_forward.1} parent=1 // pred_region
      %172 = dma.done [#allocation18], 1024
    $region85: #{net_forward.1} parent=1 // pred_fallthru
      _
    // Predicated region
    $region86: #{net_forward.1} parent=1 // pred_check
      _
    $region87: #{net_forward.1} parent=1 // pred_check_branch
      %174 = sbr.rel (0) target = $region89
    $region88: #{net_forward.1} parent=1 // pred_region
      %175 = dma.done [#allocation18], 16
    $region89: #{net_forward.1} parent=1 // pred_fallthru
      _
    %v177 = vld [vmem:[#allocation2] sm:$0xff]
    %v178 = vld [vmem:[#allocation2 + $0x8] sm:$0xff]
    %v179 = vld [vmem:[#allocation2 + $0x10] sm:$0xff]
    %v180 = vld [vmem:[#allocation2 + $0x18] sm:$0xff]
    %v181 = vpack.c.bf16 %v178, %v177
    %v182 = vpack.c.bf16 %v180, %v179
    %v183 = vld [vmem:[#allocation5] sm:$0xf]
    %v184 = vld [vmem:[#allocation5 + $0x4] sm:$0xf]
    %v185 = vld [vmem:[#allocation5 + $0x8] sm:$0xf]
    %v186 = vld [vmem:[#allocation5 + $0xc] sm:$0xf]
    %v187 = vld [vmem:[#allocation5 + $0x10] sm:$0xf]
    %v188 = vld [vmem:[#allocation5 + $0x14] sm:$0xf]
    %v189 = vld [vmem:[#allocation5 + $0x18] sm:$0xf]
    %v190 = vld [vmem:[#allocation5 + $0x1c] sm:$0xf]
    %v191 = vld [vmem:[#allocation5 + $0x20] sm:$0xf]
    %v192 = vld [vmem:[#allocation5 + $0x24] sm:$0xf]
    %v193 = vld [vmem:[#allocation5 + $0x28] sm:$0xf]
    %v194 = vld [vmem:[#allocation5 + $0x2c] sm:$0xf]
    %v195 = vld [vmem:[#allocation5 + $0x30] sm:$0xf]
    %v196 = vld [vmem:[#allocation5 + $0x34] sm:$0xf]
    %v197 = vld [vmem:[#allocation5 + $0x38] sm:$0xf]
    %v198 = vld [vmem:[#allocation5 + $0x3c] sm:$0xf]
    %v199 = vld [vmem:[#allocation7] sm:$0x1]
    %v201 = vlaneseq
    %v202 = vshrl.u32 %v201, 7
    %v203 = vsub.s32 0, %v202
    %v204 = vrot.slane %v199, %v203
    %v222 = vunpack.c.l.b16 %v183
    %v223 = vunpack.c.l.b16 %v184
    %v224 = vunpack.c.l.b16 %v185
    %v225 = vunpack.c.l.b16 %v186
    %v226 = vunpack.c.l.b16 %v187
    %v227 = vunpack.c.l.b16 %v188
    %v228 = vunpack.c.l.b16 %v189
    %v229 = vunpack.c.l.b16 %v190
    %v230 = vunpack.c.l.b16 %v191
    %v231 = vunpack.c.l.b16 %v192
    %v232 = vunpack.c.l.b16 %v193
    %v233 = vunpack.c.l.b16 %v194
    %v234 = vunpack.c.l.b16 %v195
    %v235 = vunpack.c.l.b16 %v196
    %v236 = vunpack.c.l.b16 %v197
    %v237 = vunpack.c.l.b16 %v198
    %v238 = vpack.c.b16 %v223, %v222
    %v239 = vpack.c.b16 %v225, %v224
    %v240 = vpack.c.b16 %v227, %v226
    %v241 = vpack.c.b16 %v229, %v228
    %v242 = vpack.c.b16 %v231, %v230
    %v243 = vpack.c.b16 %v233, %v232
    %v244 = vpack.c.b16 %v235, %v234
    %v245 = vpack.c.b16 %v237, %v236
    %254 = vmatprep.subr.bf16.mxu0 0
    %255 = vmatpush1.bf16.msra.mxu0 %v238
    %256 = vmatprep.subr.bf16.mxu0 0
    %257 = vmatpush1.bf16.msra.mxu0 %v239
    %258 = vmatprep.subr.bf16.mxu0 0
    %259 = vmatpush1.bf16.msra.mxu0 %v240
    %260 = vmatprep.subr.bf16.mxu0 0
    %261 = vmatpush1.bf16.msra.mxu0 %v241
    %262 = vmatprep.subr.bf16.mxu0 0
    %263 = vmatpush1.bf16.msra.mxu0 %v242
    %264 = vmatprep.subr.bf16.mxu0 0
    %265 = vmatpush1.bf16.msra.mxu0 %v243
    %266 = vmatprep.subr.bf16.mxu0 0
    %267 = vmatpush1.bf16.msra.mxu0 %v244
    %268 = vmatprep.subr.bf16.mxu0 0
    %269 = vmatpush1.bf16.msra.mxu0 %v245
    %270 = vmatprep.subr.bf16.mxu0 0
    %271 = vmatpush1.bf16.msra.mxu0 0
    %272 = vmatprep.subr.bf16.mxu0 0
    %273 = vmatpush1.bf16.msra.mxu0 0
    %274 = vmatprep.subr.bf16.mxu0 0
    %275 = vmatpush1.bf16.msra.mxu0 0
    %276 = vmatprep.subr.bf16.mxu0 0
    %277 = vmatpush1.bf16.msra.mxu0 0
    %278 = vmatprep.subr.bf16.mxu0 0
    %279 = vmatpush1.bf16.msra.mxu0 0
    %280 = vmatprep.subr.bf16.mxu0 0
    %281 = vmatpush1.bf16.msra.mxu0 0
    %282 = vmatprep.subr.bf16.mxu0 0
    %283 = vmatpush1.bf16.msra.mxu0 0
    %284 = vmatprep.subr.bf16.mxu0 0
    %285 = vmatpush1.bf16.msra.mxu0 0
    %286 = vmatprep.mubr.bf16.mxu0 0
    %287 = vmatmul.mubr.bf16.gmra.mrb[0].mxu0 %v181
    %v288 = vpop.f32.mrb[0].mxu0
    %v289 = vadd.f32 %v204, %v288
    %v290 = vpop.f32.mrb[0].mxu0
    %v291 = vpop.f32.mrb[0].mxu0
    %v292 = vadd.f32 %v204, %v291
    %v293 = vpop.f32.mrb[0].mxu0
    %294 = vmatprep.mubr.bf16.mxu0 0
    %295 = vmatmul.mubr.bf16.gmra.mrb[0].mxu0 %v182
    %v296 = vpop.f32.mrb[0].mxu0
    %v297 = vadd.f32 %v204, %v296
    %v298 = vpop.f32.mrb[0].mxu0
    %v299 = vpop.f32.mrb[0].mxu0
    %v300 = vadd.f32 %v204, %v299
    %v301 = vpop.f32.mrb[0].mxu0
    %302 = vdwg.mxu0
    %303 = vadd.xlane.f32.xlu0 %v289
    %v304 = vpop.xlane.xlu0 %303
    %305 = vadd.xlane.f32.xlu0 %v292
    %v306 = vpop.xlane.xlu0 %305
    %307 = vadd.xlane.f32.xlu0 %v297
    %v308 = vpop.xlane.xlu0 %307
    %309 = vadd.xlane.f32.xlu0 %v300
    %v310 = vpop.xlane.xlu0 %309
    %v311 = vrcp.pop 128.0
    %v312 = vmul.f32 %v304, %v311
    %v313 = vmul.f32 %v306, %v311
    %v314 = vmul.f32 %v308, %v311
    %v315 = vmul.f32 %v310, %v311
    %v316 = vsub.f32 %v289, %v312
    %v317 = vsub.f32 %v292, %v313
    %v318 = vsub.f32 %v297, %v314
    %v319 = vsub.f32 %v300, %v315
    %v320 = vmul.f32 %v316, %v316
    %v321 = vmul.f32 %v317, %v317
    %v322 = vmul.f32 %v318, %v318
    %v323 = vmul.f32 %v319, %v319
    %324 = vadd.xlane.f32.xlu0 %v320
    %v325 = vpop.xlane.xlu0 %324
    %326 = vadd.xlane.f32.xlu0 %v321
    %v327 = vpop.xlane.xlu0 %326
    %328 = vadd.xlane.f32.xlu0 %v322
    %v329 = vpop.xlane.xlu0 %328
    %330 = vadd.xlane.f32.xlu0 %v323
    %v331 = vpop.xlane.xlu0 %330
    %v332 = vmul.f32 %v325, %v311
    %v333 = vmul.f32 %v327, %v311
    %v334 = vmul.f32 %v329, %v311
    %v335 = vmul.f32 %v331, %v311
    %v336 = vadd.f32 %v332, 1e-05
    %v337 = vadd.f32 %v333, 1e-05
    %v338 = vadd.f32 %v334, 1e-05
    %v339 = vadd.f32 %v335, 1e-05
    %v340 = vrsqrt.pop %v336
    %v341 = vrsqrt.pop %v337
    %v342 = vrsqrt.pop %v338
    %v343 = vrsqrt.pop %v339
    %v344 = vmul.f32 %v316, %v340
    %v345 = vmul.f32 %v317, %v341
    %v346 = vmul.f32 %v318, %v342
    %v347 = vmul.f32 %v319, %v343
    %v348 = vld [vmem:[#allocation8] sm:$0x1]
    %v350 = vlaneseq
    %v351 = vshrl.u32 %v350, 7
    %v352 = vsub.s32 0, %v351
    %v353 = vrot.slane %v348, %v352
    %v355 = vmul.f32 %v344, %v353
    %v356 = vmul.f32 %v345, %v353
    %v357 = vmul.f32 %v346, %v353
    %v358 = vmul.f32 %v347, %v353
    %v359 = vld [vmem:[#allocation10] sm:$0x1]
    %v361 = vlaneseq
    %v362 = vshrl.u32 %v361, 7
    %v363 = vsub.s32 0, %v362
    %v364 = vrot.slane %v359, %v363
    %v366 = vadd.f32 %v355, %v364
    %v367 = vadd.f32 %v356, %v364
    %v368 = vadd.f32 %v357, %v364
    %v369 = vadd.f32 %v358, %v364
    %v370 = vpack.c.bf16 %v367, %v366
    %v371 = vpack.c.bf16 %v369, %v368
    %v372 = vld [vmem:[#allocation11] sm:$0xff]
    %v373 = vld [vmem:[#allocation11 + $0x8] sm:$0xff]
    %v374 = vld [vmem:[#allocation11 + $0x10] sm:$0xff]
    %v375 = vld [vmem:[#allocation11 + $0x18] sm:$0xff]
    %v376 = vld [vmem:[#allocation11 + $0x20] sm:$0xff]
    %v377 = vld [vmem:[#allocation11 + $0x28] sm:$0xff]
    %v378 = vld [vmem:[#allocation11 + $0x30] sm:$0xff]
    %v379 = vld [vmem:[#allocation11 + $0x38] sm:$0xff]
    %v380 = vld [vmem:[#allocation11 + $0x40] sm:$0xff]
    %v381 = vld [vmem:[#allocation11 + $0x48] sm:$0xff]
    %v382 = vld [vmem:[#allocation11 + $0x50] sm:$0xff]
    %v383 = vld [vmem:[#allocation11 + $0x58] sm:$0xff]
    %v384 = vld [vmem:[#allocation11 + $0x60] sm:$0xff]
    %v385 = vld [vmem:[#allocation11 + $0x68] sm:$0xff]
    %v386 = vld [vmem:[#allocation11 + $0x70] sm:$0xff]
    %v387 = vld [vmem:[#allocation11 + $0x78] sm:$0xff]
    %v388 = vld [vmem:[#allocation13] sm:$0x3]
    %v390 = vlaneseq
    %v391 = vshrl.u32 %v390, 7
    %v392 = vsub.s32 0, %v391
    %v393 = vrot.slane %v388, %v392
    %v394 = vlaneseq
    %v395 = vshrl.u32 %v394, 7
    %v396 = vsub.s32 1, %v395
    %v397 = vrot.slane %v388, %v396
    %v416 = vunpack.c.l.b16 %v372
    %v417 = vunpack.c.h.b16 %v372
    %v418 = vunpack.c.l.b16 %v373
    %v419 = vunpack.c.h.b16 %v373
    %v420 = vunpack.c.l.b16 %v374
    %v421 = vunpack.c.h.b16 %v374
    %v422 = vunpack.c.l.b16 %v375
    %v423 = vunpack.c.h.b16 %v375
    %v424 = vunpack.c.l.b16 %v376
    %v425 = vunpack.c.h.b16 %v376
    %v426 = vunpack.c.l.b16 %v377
    %v427 = vunpack.c.h.b16 %v377
    %v428 = vunpack.c.l.b16 %v378
    %v429 = vunpack.c.h.b16 %v378
    %v430 = vunpack.c.l.b16 %v379
    %v431 = vunpack.c.h.b16 %v379
    %v432 = vunpack.c.l.b16 %v380
    %v433 = vunpack.c.h.b16 %v380
    %v434 = vunpack.c.l.b16 %v381
    %v435 = vunpack.c.h.b16 %v381
    %v436 = vunpack.c.l.b16 %v382
    %v437 = vunpack.c.h.b16 %v382
    %v438 = vunpack.c.l.b16 %v383
    %v439 = vunpack.c.h.b16 %v383
    %v440 = vunpack.c.l.b16 %v384
    %v441 = vunpack.c.h.b16 %v384
    %v442 = vunpack.c.l.b16 %v385
    %v443 = vunpack.c.h.b16 %v385
    %v444 = vunpack.c.l.b16 %v386
    %v445 = vunpack.c.h.b16 %v386
    %v446 = vunpack.c.l.b16 %v387
    %v447 = vunpack.c.h.b16 %v387
    %v448 = vpack.c.b16 %v418, %v416
    %v449 = vpack.c.b16 %v419, %v417
    %v450 = vpack.c.b16 %v422, %v420
    %v451 = vpack.c.b16 %v423, %v421
    %v452 = vpack.c.b16 %v426, %v424
    %v453 = vpack.c.b16 %v427, %v425
    %v454 = vpack.c.b16 %v430, %v428
    %v455 = vpack.c.b16 %v431, %v429
    %v456 = vpack.c.b16 %v434, %v432
    %v457 = vpack.c.b16 %v435, %v433
    %v458 = vpack.c.b16 %v438, %v436
    %v459 = vpack.c.b16 %v439, %v437
    %v460 = vpack.c.b16 %v442, %v440
    %v461 = vpack.c.b16 %v443, %v441
    %v462 = vpack.c.b16 %v446, %v444
    %v463 = vpack.c.b16 %v447, %v445
    %480 = vmatprep.subr.bf16.mxu0 %v449
    %481 = vmatpush1.bf16.msra.mxu0 %v448
    %482 = vmatprep.subr.bf16.mxu0 %v451
    %483 = vmatpush1.bf16.msra.mxu0 %v450
    %484 = vmatprep.subr.bf16.mxu0 %v453
    %485 = vmatpush1.bf16.msra.mxu0 %v452
    %486 = vmatprep.subr.bf16.mxu0 %v455
    %487 = vmatpush1.bf16.msra.mxu0 %v454
    %488 = vmatprep.subr.bf16.mxu0 %v457
    %489 = vmatpush1.bf16.msra.mxu0 %v456
    %490 = vmatprep.subr.bf16.mxu0 %v459
    %491 = vmatpush1.bf16.msra.mxu0 %v458
    %492 = vmatprep.subr.bf16.mxu0 %v461
    %493 = vmatpush1.bf16.msra.mxu0 %v460
    %494 = vmatprep.subr.bf16.mxu0 %v463
    %495 = vmatpush1.bf16.msra.mxu0 %v462
    %496 = vmatprep.subr.bf16.mxu0 0
    %497 = vmatpush1.bf16.msra.mxu0 0
    %498 = vmatprep.subr.bf16.mxu0 0
    %499 = vmatpush1.bf16.msra.mxu0 0
    %500 = vmatprep.subr.bf16.mxu0 0
    %501 = vmatpush1.bf16.msra.mxu0 0
    %502 = vmatprep.subr.bf16.mxu0 0
    %503 = vmatpush1.bf16.msra.mxu0 0
    %504 = vmatprep.subr.bf16.mxu0 0
    %505 = vmatpush1.bf16.msra.mxu0 0
    %506 = vmatprep.subr.bf16.mxu0 0
    %507 = vmatpush1.bf16.msra.mxu0 0
    %508 = vmatprep.subr.bf16.mxu0 0
    %509 = vmatpush1.bf16.msra.mxu0 0
    %510 = vmatprep.subr.bf16.mxu0 0
    %511 = vmatpush1.bf16.msra.mxu0 0
    %512 = vmatprep.mubr.bf16.mxu0 0
    %513 = vmatmul.mubr.bf16.gmra.mrb[0].mxu0 %v370
    %v514 = vpop.f32.mrb[0].mxu0
    %v515 = vadd.f32 %v393, %v514
    %v516 = vpop.f32.mrb[0].mxu0
    %v517 = vadd.f32 %v397, %v516
    %v518 = vpop.f32.mrb[0].mxu0
    %v519 = vadd.f32 %v393, %v518
    %v520 = vpop.f32.mrb[0].mxu0
    %v521 = vadd.f32 %v397, %v520
    %522 = vmatprep.mubr.bf16.mxu0 0
    %523 = vmatmul.mubr.bf16.gmra.mrb[0].mxu0 %v371
    %v524 = vpop.f32.mrb[0].mxu0
    %v525 = vadd.f32 %v393, %v524
    %v526 = vpop.f32.mrb[0].mxu0
    %v527 = vadd.f32 %v397, %v526
    %v528 = vpop.f32.mrb[0].mxu0
    %v529 = vadd.f32 %v393, %v528
    %v530 = vpop.f32.mrb[0].mxu0
    %v531 = vadd.f32 %v397, %v530
    %532 = vdwg.mxu0
    %v533 = vxor.u32 %v515, 2147483648
    %v534 = vxor.u32 %v519, 2147483648
    %v535 = vxor.u32 %v525, 2147483648
    %v536 = vxor.u32 %v529, 2147483648
    %v537 = vmul.f32 %v533, 1.442695
    %v538 = vpow.pop %v537
    %v539 = vmul.f32 %v534, 1.442695
    %v540 = vpow.pop %v539
    %v541 = vmul.f32 %v535, 1.442695
    %v542 = vpow.pop %v541
    %v543 = vmul.f32 %v536, 1.442695
    %v544 = vpow.pop %v543
    %v545 = vadd.f32 %v538, 1.0
    %v546 = vadd.f32 %v540, 1.0
    %v547 = vadd.f32 %v542, 1.0
    %v548 = vadd.f32 %v544, 1.0
    %v549 = vrcp.pop %v545
    %v550 = vmul.f32 1.0, %v549
    %v551 = vrcp.pop %v546
    %v552 = vmul.f32 1.0, %v551
    %v553 = vrcp.pop %v547
    %v554 = vmul.f32 1.0, %v553
    %v555 = vrcp.pop %v548
    %v556 = vmul.f32 1.0, %v555
    %v557 = vmul.f32 %v515, %v550
    %v558 = vmul.f32 %v519, %v552
    %v559 = vmul.f32 %v525, %v554
    %v560 = vmul.f32 %v529, %v556
    %v561 = vxor.u32 %v517, 2147483648
    %v562 = vxor.u32 %v521, 2147483648
    %v563 = vxor.u32 %v527, 2147483648
    %v564 = vxor.u32 %v531, 2147483648
    %v565 = vmul.f32 %v561, 1.442695
    %v566 = vpow.pop %v565
    %v567 = vmul.f32 %v562, 1.442695
    %v568 = vpow.pop %v567
    %v569 = vmul.f32 %v563, 1.442695
    %v570 = vpow.pop %v569
    %v571 = vmul.f32 %v564, 1.442695
    %v572 = vpow.pop %v571
    %v573 = vadd.f32 %v566, 1.0
    %v574 = vadd.f32 %v568, 1.0
    %v575 = vadd.f32 %v570, 1.0
    %v576 = vadd.f32 %v572, 1.0
    %v577 = vrcp.pop %v573
    %v578 = vmul.f32 1.0, %v577
    %v579 = vrcp.pop %v574
    %v580 = vmul.f32 1.0, %v579
    %v581 = vrcp.pop %v575
    %v582 = vmul.f32 1.0, %v581
    %v583 = vrcp.pop %v576
    %v584 = vmul.f32 1.0, %v583
    %v585 = vmul.f32 %v517, %v578
    %v586 = vmul.f32 %v521, %v580
    %v587 = vmul.f32 %v527, %v582
    %v588 = vmul.f32 %v531, %v584
    %v589 = vmul.f32 %v557, %v585
    %v590 = vmul.f32 %v558, %v586
    %v591 = vmul.f32 %v559, %v587
    %v592 = vmul.f32 %v560, %v588
    %v593 = vpack.c.bf16 %v590, %v589
    %v594 = vpack.c.bf16 %v592, %v591
    %v595 = vld [vmem:[#allocation14] sm:$0xf]
    %v596 = vld [vmem:[#allocation14 + $0x4] sm:$0xf]
    %v597 = vld [vmem:[#allocation14 + $0x8] sm:$0xf]
    %v598 = vld [vmem:[#allocation14 + $0xc] sm:$0xf]
    %v599 = vld [vmem:[#allocation14 + $0x10] sm:$0xf]
    %v600 = vld [vmem:[#allocation14 + $0x14] sm:$0xf]
    %v601 = vld [vmem:[#allocation14 + $0x18] sm:$0xf]
    %v602 = vld [vmem:[#allocation14 + $0x1c] sm:$0xf]
    %v603 = vld [vmem:[#allocation14 + $0x20] sm:$0xf]
    %v604 = vld [vmem:[#allocation14 + $0x24] sm:$0xf]
    %v605 = vld [vmem:[#allocation14 + $0x28] sm:$0xf]
    %v606 = vld [vmem:[#allocation14 + $0x2c] sm:$0xf]
    %v607 = vld [vmem:[#allocation14 + $0x30] sm:$0xf]
    %v608 = vld [vmem:[#allocation14 + $0x34] sm:$0xf]
    %v609 = vld [vmem:[#allocation14 + $0x38] sm:$0xf]
    %v610 = vld [vmem:[#allocation14 + $0x3c] sm:$0xf]
    %v611 = vld [vmem:[#allocation16] sm:$0x1]
    %v613 = vlaneseq
    %v614 = vshrl.u32 %v613, 7
    %v615 = vsub.s32 0, %v614
    %v616 = vrot.slane %v611, %v615
    %v634 = vunpack.c.l.b16 %v595
    %v635 = vunpack.c.l.b16 %v596
    %v636 = vunpack.c.l.b16 %v597
    %v637 = vunpack.c.l.b16 %v598
    %v638 = vunpack.c.l.b16 %v599
    %v639 = vunpack.c.l.b16 %v600
    %v640 = vunpack.c.l.b16 %v601
    %v641 = vunpack.c.l.b16 %v602
    %v642 = vunpack.c.l.b16 %v603
    %v643 = vunpack.c.l.b16 %v604
    %v644 = vunpack.c.l.b16 %v605
    %v645 = vunpack.c.l.b16 %v606
    %v646 = vunpack.c.l.b16 %v607
    %v647 = vunpack.c.l.b16 %v608
    %v648 = vunpack.c.l.b16 %v609
    %v649 = vunpack.c.l.b16 %v610
    %v650 = vpack.c.b16 %v635, %v634
    %v651 = vpack.c.b16 %v637, %v636
    %v652 = vpack.c.b16 %v639, %v638
    %v653 = vpack.c.b16 %v641, %v640
    %v654 = vpack.c.b16 %v643, %v642
    %v655 = vpack.c.b16 %v645, %v644
    %v656 = vpack.c.b16 %v647, %v646
    %v657 = vpack.c.b16 %v649, %v648
    %666 = vmatprep.subr.bf16.mxu0 0
    %667 = vmatpush1.bf16.msra.mxu0 %v650
    %668 = vmatprep.subr.bf16.mxu0 0
    %669 = vmatpush1.bf16.msra.mxu0 %v651
    %670 = vmatprep.subr.bf16.mxu0 0
    %671 = vmatpush1.bf16.msra.mxu0 %v652
    %672 = vmatprep.subr.bf16.mxu0 0
    %673 = vmatpush1.bf16.msra.mxu0 %v653
    %674 = vmatprep.subr.bf16.mxu0 0
    %675 = vmatpush1.bf16.msra.mxu0 %v654
    %676 = vmatprep.subr.bf16.mxu0 0
    %677 = vmatpush1.bf16.msra.mxu0 %v655
    %678 = vmatprep.subr.bf16.mxu0 0
    %679 = vmatpush1.bf16.msra.mxu0 %v656
    %680 = vmatprep.subr.bf16.mxu0 0
    %681 = vmatpush1.bf16.msra.mxu0 %v657
    %682 = vmatprep.subr.bf16.mxu0 0
    %683 = vmatpush1.bf16.msra.mxu0 0
    %684 = vmatprep.subr.bf16.mxu0 0
    %685 = vmatpush1.bf16.msra.mxu0 0
    %686 = vmatprep.subr.bf16.mxu0 0
    %687 = vmatpush1.bf16.msra.mxu0 0
    %688 = vmatprep.subr.bf16.mxu0 0
    %689 = vmatpush1.bf16.msra.mxu0 0
    %690 = vmatprep.subr.bf16.mxu0 0
    %691 = vmatpush1.bf16.msra.mxu0 0
    %692 = vmatprep.subr.bf16.mxu0 0
    %693 = vmatpush1.bf16.msra.mxu0 0
    %694 = vmatprep.subr.bf16.mxu0 0
    %695 = vmatpush1.bf16.msra.mxu0 0
    %696 = vmatprep.subr.bf16.mxu0 0
    %697 = vmatpush1.bf16.msra.mxu0 0
    %698 = vmatprep.mubr.bf16.mxu0 0
    %699 = vmatmul.mubr.bf16.gmra.mrb[0].mxu0 %v593
    %v700 = vpop.f32.mrb[0].mxu0
    %v701 = vadd.f32 %v616, %v700
    %v702 = vpop.f32.mrb[0].mxu0
    %v703 = vpop.f32.mrb[0].mxu0
    %v704 = vadd.f32 %v616, %v703
    %v705 = vpop.f32.mrb[0].mxu0
    %706 = vmatprep.mubr.bf16.mxu0 0
    %707 = vmatmul.mubr.bf16.gmra.mrb[0].mxu0 %v594
    %v708 = vpop.f32.mrb[0].mxu0
    %v709 = vadd.f32 %v616, %v708
    %v710 = vpop.f32.mrb[0].mxu0
    %v711 = vpop.f32.mrb[0].mxu0
    %v712 = vadd.f32 %v616, %v711
    %v713 = vpop.f32.mrb[0].mxu0
    %714 = vdwg.mxu0
    %v715 = vadd.f32 %v701, %v289
    %v716 = vadd.f32 %v704, %v292
    %v717 = vadd.f32 %v709, %v297
    %v718 = vadd.f32 %v712, %v300
    %v719 = vpack.c.bf16 %v716, %v715
    %v720 = vpack.c.bf16 %v718, %v717
    %v721 = vld [vmem:[#allocation17] sm:$0xf]
    %v722 = vld [vmem:[#allocation17 + $0x4] sm:$0xf]
    %v723 = vld [vmem:[#allocation17 + $0x8] sm:$0xf]
    %v724 = vld [vmem:[#allocation17 + $0xc] sm:$0xf]
    %v725 = vld [vmem:[#allocation17 + $0x10] sm:$0xf]
    %v726 = vld [vmem:[#allocation17 + $0x14] sm:$0xf]
    %v727 = vld [vmem:[#allocation17 + $0x18] sm:$0xf]
    %v728 = vld [vmem:[#allocation17 + $0x1c] sm:$0xf]
    %v729 = vld [vmem:[#allocation17 + $0x20] sm:$0xf]
    %v730 = vld [vmem:[#allocation17 + $0x24] sm:$0xf]
    %v731 = vld [vmem:[#allocation17 + $0x28] sm:$0xf]
    %v732 = vld [vmem:[#allocation17 + $0x2c] sm:$0xf]
    %v733 = vld [vmem:[#allocation17 + $0x30] sm:$0xf]
    %v734 = vld [vmem:[#allocation17 + $0x34] sm:$0xf]
    %v735 = vld [vmem:[#allocation17 + $0x38] sm:$0xf]
    %v736 = vld [vmem:[#allocation17 + $0x3c] sm:$0xf]
    %v737 = vld [vmem:[#allocation19] sm:$0x1]
    %v739 = vlaneseq
    %v740 = vshrl.u32 %v739, 7
    %v741 = vsub.s32 0, %v740
    %v742 = vrot.slane %v737, %v741
    %v760 = vunpack.c.l.b16 %v721
    %v761 = vunpack.c.l.b16 %v722
    %v762 = vunpack.c.l.b16 %v723
    %v763 = vunpack.c.l.b16 %v724
    %v764 = vunpack.c.l.b16 %v725
    %v765 = vunpack.c.l.b16 %v726
    %v766 = vunpack.c.l.b16 %v727
    %v767 = vunpack.c.l.b16 %v728
    %v768 = vunpack.c.l.b16 %v729
    %v769 = vunpack.c.l.b16 %v730
    %v770 = vunpack.c.l.b16 %v731
    %v771 = vunpack.c.l.b16 %v732
    %v772 = vunpack.c.l.b16 %v733
    %v773 = vunpack.c.l.b16 %v734
    %v774 = vunpack.c.l.b16 %v735
    %v775 = vunpack.c.l.b16 %v736
    %v776 = vpack.c.b16 %v761, %v760
    %v777 = vpack.c.b16 %v763, %v762
    %v778 = vpack.c.b16 %v765, %v764
    %v779 = vpack.c.b16 %v767, %v766
    %v780 = vpack.c.b16 %v769, %v768
    %v781 = vpack.c.b16 %v771, %v770
    %v782 = vpack.c.b16 %v773, %v772
    %v783 = vpack.c.b16 %v775, %v774
    %792 = vmatprep.subr.bf16.mxu0 0
    %793 = vmatpush1.bf16.msra.mxu0 %v776
    %794 = vmatprep.subr.bf16.mxu0 0
    %795 = vmatpush1.bf16.msra.mxu0 %v777
    %796 = vmatprep.subr.bf16.mxu0 0
    %797 = vmatpush1.bf16.msra.mxu0 %v778
    %798 = vmatprep.subr.bf16.mxu0 0
    %799 = vmatpush1.bf16.msra.mxu0 %v779
    %800 = vmatprep.subr.bf16.mxu0 0
    %801 = vmatpush1.bf16.msra.mxu0 %v780
    %802 = vmatprep.subr.bf16.mxu0 0
    %803 = vmatpush1.bf16.msra.mxu0 %v781
    %804 = vmatprep.subr.bf16.mxu0 0
    %805 = vmatpush1.bf16.msra.mxu0 %v782
    %806 = vmatprep.subr.bf16.mxu0 0
    %807 = vmatpush1.bf16.msra.mxu0 %v783
    %808 = vmatprep.subr.bf16.mxu0 0
    %809 = vmatpush1.bf16.msra.mxu0 0
    %810 = vmatprep.subr.bf16.mxu0 0
    %811 = vmatpush1.bf16.msra.mxu0 0
    %812 = vmatprep.subr.bf16.mxu0 0
    %813 = vmatpush1.bf16.msra.mxu0 0
    %814 = vmatprep.subr.bf16.mxu0 0
    %815 = vmatpush1.bf16.msra.mxu0 0
    %816 = vmatprep.subr.bf16.mxu0 0
    %817 = vmatpush1.bf16.msra.mxu0 0
    %818 = vmatprep.subr.bf16.mxu0 0
    %819 = vmatpush1.bf16.msra.mxu0 0
    %820 = vmatprep.subr.bf16.mxu0 0
    %821 = vmatpush1.bf16.msra.mxu0 0
    %822 = vmatprep.subr.bf16.mxu0 0
    %823 = vmatpush1.bf16.msra.mxu0 0
    %824 = vmatprep.mubr.bf16.mxu0 0
    %825 = vmatmul.mubr.bf16.gmra.mrb[0].mxu0 %v719
    %v826 = vpop.f32.mrb[0].mxu0
    %v827 = vadd.f32 %v742, %v826
    %v828 = vpop.f32.mrb[0].mxu0
    %v829 = vpop.f32.mrb[0].mxu0
    %v830 = vadd.f32 %v742, %v829
    %v831 = vpop.f32.mrb[0].mxu0
    %832 = vmatprep.mubr.bf16.mxu0 0
    %833 = vmatmul.mubr.bf16.gmra.mrb[0].mxu0 %v720
    %v834 = vpop.f32.mrb[0].mxu0
    %v835 = vadd.f32 %v742, %v834
    %v836 = vpop.f32.mrb[0].mxu0
    %v837 = vpop.f32.mrb[0].mxu0
    %v838 = vadd.f32 %v742, %v837
    %v839 = vpop.f32.mrb[0].mxu0
    %840 = vdwg.mxu0
    %v841 = vadd.f32 %v827, %v177
    %v842 = vadd.f32 %v830, %v178
    %v843 = vadd.f32 %v835, %v179
    %v844 = vadd.f32 %v838, %v180
    %845 = vst [vmem:[#allocation20] sm:$0xff] %v841
    %846 = vst [vmem:[#allocation20 + $0x8] sm:$0xff] %v842
    %847 = vst [vmem:[#allocation20 + $0x10] sm:$0xff] %v843
    %848 = vst [vmem:[#allocation20 + $0x18] sm:$0xff] %v844
    // Predicated region
    $region90: #{net_forward.1} parent=1 // pred_check
      _
    $region91: #{net_forward.1} parent=1 // pred_check_branch
      %850 = sbr.rel (0) target = $region93
    $region92: #{net_forward.1} parent=1 // pred_region
      %s852 = ssub.s32 512, 512
      %853 = vsyncadd [#allocation4], %s852
      %s854 = sshll.u32 [#allocation20], 4
      %s855 = int_to_ptr.vmem [resolvable:$true] %s854
      %860 = dma.vmem_to_hbm [thread:$0]  %s855, 512, %s11, [#allocation4], 128, 128, 8
    $region93: #{net_forward.1} parent=1 // pred_fallthru
      _
    // Predicated region
    $region94: #{net_forward.1} parent=1 // pred_check
      _
    $region95: #{net_forward.1} parent=1 // pred_check_branch
      %862 = sbr.rel (0) target = $region97
    $region96: #{net_forward.1} parent=1 // pred_region
      %863 = dma.done [#allocation4], 512
    $region97: #{net_forward.1} parent=1 // pred_fallthru
      _
    %864 = vsyncpa [#allocation3], 1
    %865 = vsyncpa [#allocation6], 1
    %866 = vsyncpa [#allocation9], 1
    %867 = vsyncpa [#allocation12], 1
    %868 = vsyncpa [#allocation15], 1
    %869 = vsyncpa [#allocation18], 1
    %870 = vsyncpa [#allocation4], 1

</llo_original>
